<compile_context>
chip_gen: v6e
topology: v6e:2x2x1
jax: 0.10.0
libtpu: 0.0.40
codegen_flags: <defaults>
</compile_context>

<pallas_src>
import jax
import jax.numpy as jnp
from jax.experimental import pallas as pl
from jax.experimental.pallas import tpu as pltpu


def _round_up(v, m):
    return ((v + m - 1) // m) * m


def _pe_add_kernel(pos_ref, x_ref, w_ref, b_ref, o_ref):
    """out = x + pos @ w + bias, all tiles already laid out lane-dense.

    pos_ref: (T, K) f32-castable   w_ref: (K, L) f32   b_ref: (1, L) f32
    x_ref / o_ref: (T, L) in x.dtype
    """
    p = pos_ref[...].astype(jnp.float32)          # (T, K)
    w = w_ref[...]                                # (K, L)
    k = w.shape[0]
    # K broadcast FMAs on the VPU (K = 3 or 3*G); exact f32, no MXU relayout.
    pe = b_ref[...] + p[:, 0:1] * w[0:1, :]
    for m in range(1, k):
        pe = pe + p[:, m:m + 1] * w[m:m + 1, :]
    o_ref[...] = x_ref[...] + pe.astype(o_ref.dtype)


def pe_generator_vanilla(pos, x, weight, bias, *, tile_rows=4096):
    """pos: (b, n, 3); x: (b, n, C); weight: (C, 3) torch layout; bias: (C,)."""
    b, n, _ = pos.shape
    c = x.shape[-1]
    p_total = b * n

    w3c = jnp.asarray(weight, jnp.float32).T.reshape(3, c)     # (3, C)
    bias_f = jnp.asarray(bias, jnp.float32).reshape(c)

    # Flatten batch into the point axis (free reshapes; same weights per batch).
    pos_flat = pos.reshape(p_total, 3)
    x_flat = x.reshape(p_total, c)

    params = pltpu.CompilerParams(dimension_semantics=("parallel",))

    use_packed = (c <= 128) and (128 % c == 0) and (p_total % (128 // c) == 0)

    if use_packed:
        # ---- lane-dense packed path -------------------------------------
        g = 128 // c                       # points per 128-lane row
        rows = p_total // g
        kdim = 3 * g

        # Block-diagonal weight: w_block[a*3 + k, a*C + cc] = W[cc, k]
        eye = jnp.eye(g, dtype=jnp.float32)
        w_block = jnp.einsum("ab,kc->akbc", eye, w3c).reshape(kdim, 128)
        b_tile = jnp.tile(bias_f, g).reshape(1, 128)

        pos_p = pos_flat.reshape(rows, kdim)     # free reshape
        x_p = x_flat.reshape(rows, 128)          # free reshape

        tr = max(8, min(_round_up(tile_rows, 8), _round_up(rows, 8)))
        grid = (pl.cdiv(rows, tr),)              # masked partial tail block

        out = pl.pallas_call(
            _pe_add_kernel,
            out_shape=jax.ShapeDtypeStruct((rows, 128), x.dtype),
            grid=grid,
            in_specs=[
                pl.BlockSpec((tr, kdim), lambda i: (i, 0)),
                pl.BlockSpec((tr, 128), lambda i: (i, 0)),
                pl.BlockSpec((kdim, 128), lambda i: (0, 0)),
                pl.BlockSpec((1, 128), lambda i: (0, 0)),
            ],
            out_specs=pl.BlockSpec((tr, 128), lambda i: (i, 0)),
            compiler_params=params,
        )(pos_p, x_p, w_block, b_tile)
        return out.reshape(b, n, c)

    # ---- general row-wise fallback (any C, any point count) -------------
    b_row = bias_f.reshape(1, c)
    tn = max(8, min(_round_up(tile_rows, 8), _round_up(p_total, 8)))
    grid = (pl.cdiv(p_total, tn),)               # masked partial tail block

    out = pl.pallas_call(
        _pe_add_kernel,
        out_shape=jax.ShapeDtypeStruct((p_total, c), x.dtype),
        grid=grid,
        in_specs=[
            pl.BlockSpec((tn, 3), lambda i: (i, 0)),
            pl.BlockSpec((tn, c), lambda i: (i, 0)),
            pl.BlockSpec((3, c), lambda i: (0, 0)),
            pl.BlockSpec((1, c), lambda i: (0, 0)),
        ],
        out_specs=pl.BlockSpec((tn, c), lambda i: (i, 0)),
        compiler_params=params,
    )(pos_flat, x_flat, w3c, b_row)
    return out.reshape(b, n, c)


def reference(pos, x, weight, bias):
    """Pure-JAX reference of PEGenerator_vanilla.forward (exact f32 FMA form)."""
    w = jnp.asarray(weight, jnp.float32)                       # (C, 3)
    pe = (pos[..., 0:1].astype(jnp.float32) * w[:, 0]
          + pos[..., 1:2].astype(jnp.float32) * w[:, 1]
          + pos[..., 2:3].astype(jnp.float32) * w[:, 2]
          + jnp.asarray(bias, jnp.float32))
    return x + pe.astype(x.dtype)


if __name__ == "__main__":
    key = jax.random.PRNGKey(0)
    k1, k2, k3, k4 = jax.random.split(key, 4)

    b, n, c = 2, 16, 32
    pos = jax.random.uniform(k1, (b, n, 3), dtype=jnp.float32)
    x = jax.random.normal(k2, (b, n, c), dtype=jnp.float32)
    # nn.Linear(3, c): weight (c, 3), bias (c,)
    weight = jax.random.normal(k3, (c, 3), dtype=jnp.float32) * 0.3
    bias = jax.random.normal(k4, (c,), dtype=jnp.float32) * 0.1

    out = jax.block_until_ready(pe_generator_vanilla(pos, x, weight, bias))
    ref = reference(pos, x, weight, bias)
    assert out.shape == (b, n, c)
    assert jnp.allclose(out, ref, rtol=1e-5, atol=1e-5), float(
        jnp.max(jnp.abs(out - ref)))

    # Packed path with a partial (masked) tail block: 40 points -> 10 rows,
    # tile of 8 rows -> grid of 2 with a 2-row valid tail.
    n2 = 20
    pos2 = jax.random.uniform(k1, (b, n2, 3), dtype=jnp.float32)
    x2 = jax.random.normal(k2, (b, n2, c), dtype=jnp.float32)
    out2 = jax.block_until_ready(
        pe_generator_vanilla(pos2, x2, weight, bias, tile_rows=8))
    ref2 = reference(pos2, x2, weight, bias)
    assert out2.shape == (b, n2, c)
    assert jnp.allclose(out2, ref2, rtol=1e-5, atol=1e-5), float(
        jnp.max(jnp.abs(out2 - ref2)))

    # Row-wise fallback path: b*n = 26 is not a multiple of the packing group.
    n3 = 13
    pos3 = jax.random.uniform(k1, (b, n3, 3), dtype=jnp.float32)
    x3 = jax.random.normal(k2, (b, n3, c), dtype=jnp.float32)
    out3 = jax.block_until_ready(pe_generator_vanilla(pos3, x3, weight, bias))
    ref3 = reference(pos3, x3, weight, bias)
    assert out3.shape == (b, n3, c)
    assert jnp.allclose(out3, ref3, rtol=1e-5, atol=1e-5), float(
        jnp.max(jnp.abs(out3 - ref3)))

    print("KERNEL_OK")
</pallas_src>

<mosaic_0001>
module attributes {stable_mosaic.version = 11 : i64} {
  func.func @_pe_add_kernel(%arg0: i32, %arg1: memref<8x12xf32, #tpu.memory_space<vmem>>, %arg2: memref<8x128xf32, #tpu.memory_space<vmem>>, %arg3: memref<12x128xf32, #tpu.memory_space<vmem>>, %arg4: memref<1x128xf32, #tpu.memory_space<vmem>>, %arg5: memref<8x128xf32, #tpu.memory_space<vmem>>) attributes {dimension_semantics = [#tpu.dimension_semantics<parallel>], iteration_bounds = array<i64: 1>, scalar_prefetch = 0 : i64, scratch_operands = 0 : i64, tpu.core_type = #tpu.core_type<tc>, window_params = [{transform_indices = @transform_0, window_bounds = array<i64: 8, 12>}, {transform_indices = @transform_1, window_bounds = array<i64: 8, 128>}, {pipeline_mode = #tpu.pipeline_mode<synchronous>, transform_indices = @transform_2, window_bounds = array<i64: 12, 128>}, {pipeline_mode = #tpu.pipeline_mode<synchronous>, transform_indices = @transform_3, window_bounds = array<i64: 1, 128>}, {transform_indices = @transform_4, window_bounds = array<i64: 8, 128>}]} {
    %c0 = arith.constant 0 : index
    %c0_0 = arith.constant 0 : index
    %0 = vector.load %arg1[%c0, %c0_0] : memref<8x12xf32, #tpu.memory_space<vmem>>, vector<8x12xf32>
    %c0_1 = arith.constant 0 : index
    %c0_2 = arith.constant 0 : index
    %1 = vector.load %arg3[%c0_1, %c0_2] : memref<12x128xf32, #tpu.memory_space<vmem>>, vector<12x128xf32>
    %c0_3 = arith.constant 0 : index
    %c0_4 = arith.constant 0 : index
    %2 = vector.load %arg4[%c0_3, %c0_4] : memref<1x128xf32, #tpu.memory_space<vmem>>, vector<1x128xf32>
    %3 = vector.extract_strided_slice %0 {offsets = [0, 0], sizes = [8, 1], strides = [1, 1]} : vector<8x12xf32> to vector<8x1xf32>
    %4 = vector.extract_strided_slice %1 {offsets = [0, 0], sizes = [1, 128], strides = [1, 1]} : vector<12x128xf32> to vector<1x128xf32>
    %5 = vector.broadcast %3 : vector<8x1xf32> to vector<8x128xf32>
    %6 = vector.broadcast %4 : vector<1x128xf32> to vector<8x128xf32>
    %7 = arith.mulf %5, %6 : vector<8x128xf32>
    %8 = vector.broadcast %2 : vector<1x128xf32> to vector<8x128xf32>
    %9 = arith.addf %8, %7 : vector<8x128xf32>
    %10 = vector.extract_strided_slice %0 {offsets = [0, 1], sizes = [8, 1], strides = [1, 1]} : vector<8x12xf32> to vector<8x1xf32>
    %11 = vector.extract_strided_slice %1 {offsets = [1, 0], sizes = [1, 128], strides = [1, 1]} : vector<12x128xf32> to vector<1x128xf32>
    %12 = vector.broadcast %10 : vector<8x1xf32> to vector<8x128xf32>
    %13 = vector.broadcast %11 : vector<1x128xf32> to vector<8x128xf32>
    %14 = arith.mulf %12, %13 : vector<8x128xf32>
    %15 = arith.addf %9, %14 : vector<8x128xf32>
    %16 = vector.extract_strided_slice %0 {offsets = [0, 2], sizes = [8, 1], strides = [1, 1]} : vector<8x12xf32> to vector<8x1xf32>
    %17 = vector.extract_strided_slice %1 {offsets = [2, 0], sizes = [1, 128], strides = [1, 1]} : vector<12x128xf32> to vector<1x128xf32>
    %18 = vector.broadcast %16 : vector<8x1xf32> to vector<8x128xf32>
    %19 = vector.broadcast %17 : vector<1x128xf32> to vector<8x128xf32>
    %20 = arith.mulf %18, %19 : vector<8x128xf32>
    %21 = arith.addf %15, %20 : vector<8x128xf32>
    %22 = vector.extract_strided_slice %0 {offsets = [0, 3], sizes = [8, 1], strides = [1, 1]} : vector<8x12xf32> to vector<8x1xf32>
    %23 = vector.extract_strided_slice %1 {offsets = [3, 0], sizes = [1, 128], strides = [1, 1]} : vector<12x128xf32> to vector<1x128xf32>
    %24 = vector.broadcast %22 : vector<8x1xf32> to vector<8x128xf32>
    %25 = vector.broadcast %23 : vector<1x128xf32> to vector<8x128xf32>
    %26 = arith.mulf %24, %25 : vector<8x128xf32>
    %27 = arith.addf %21, %26 : vector<8x128xf32>
    %28 = vector.extract_strided_slice %0 {offsets = [0, 4], sizes = [8, 1], strides = [1, 1]} : vector<8x12xf32> to vector<8x1xf32>
    %29 = vector.extract_strided_slice %1 {offsets = [4, 0], sizes = [1, 128], strides = [1, 1]} : vector<12x128xf32> to vector<1x128xf32>
    %30 = vector.broadcast %28 : vector<8x1xf32> to vector<8x128xf32>
    %31 = vector.broadcast %29 : vector<1x128xf32> to vector<8x128xf32>
    %32 = arith.mulf %30, %31 : vector<8x128xf32>
    %33 = arith.addf %27, %32 : vector<8x128xf32>
    %34 = vector.extract_strided_slice %0 {offsets = [0, 5], sizes = [8, 1], strides = [1, 1]} : vector<8x12xf32> to vector<8x1xf32>
    %35 = vector.extract_strided_slice %1 {offsets = [5, 0], sizes = [1, 128], strides = [1, 1]} : vector<12x128xf32> to vector<1x128xf32>
    %36 = vector.broadcast %34 : vector<8x1xf32> to vector<8x128xf32>
    %37 = vector.broadcast %35 : vector<1x128xf32> to vector<8x128xf32>
    %38 = arith.mulf %36, %37 : vector<8x128xf32>
    %39 = arith.addf %33, %38 : vector<8x128xf32>
    %40 = vector.extract_strided_slice %0 {offsets = [0, 6], sizes = [8, 1], strides = [1, 1]} : vector<8x12xf32> to vector<8x1xf32>
    %41 = vector.extract_strided_slice %1 {offsets = [6, 0], sizes = [1, 128], strides = [1, 1]} : vector<12x128xf32> to vector<1x128xf32>
    %42 = vector.broadcast %40 : vector<8x1xf32> to vector<8x128xf32>
    %43 = vector.broadcast %41 : vector<1x128xf32> to vector<8x128xf32>
    %44 = arith.mulf %42, %43 : vector<8x128xf32>
    %45 = arith.addf %39, %44 : vector<8x128xf32>
    %46 = vector.extract_strided_slice %0 {offsets = [0, 7], sizes = [8, 1], strides = [1, 1]} : vector<8x12xf32> to vector<8x1xf32>
    %47 = vector.extract_strided_slice %1 {offsets = [7, 0], sizes = [1, 128], strides = [1, 1]} : vector<12x128xf32> to vector<1x128xf32>
    %48 = vector.broadcast %46 : vector<8x1xf32> to vector<8x128xf32>
    %49 = vector.broadcast %47 : vector<1x128xf32> to vector<8x128xf32>
    %50 = arith.mulf %48, %49 : vector<8x128xf32>
    %51 = arith.addf %45, %50 : vector<8x128xf32>
    %52 = vector.extract_strided_slice %0 {offsets = [0, 8], sizes = [8, 1], strides = [1, 1]} : vector<8x12xf32> to vector<8x1xf32>
    %53 = vector.extract_strided_slice %1 {offsets = [8, 0], sizes = [1, 128], strides = [1, 1]} : vector<12x128xf32> to vector<1x128xf32>
    %54 = vector.broadcast %52 : vector<8x1xf32> to vector<8x128xf32>
    %55 = vector.broadcast %53 : vector<1x128xf32> to vector<8x128xf32>
    %56 = arith.mulf %54, %55 : vector<8x128xf32>
    %57 = arith.addf %51, %56 : vector<8x128xf32>
    %58 = vector.extract_strided_slice %0 {offsets = [0, 9], sizes = [8, 1], strides = [1, 1]} : vector<8x12xf32> to vector<8x1xf32>
    %59 = vector.extract_strided_slice %1 {offsets = [9, 0], sizes = [1, 128], strides = [1, 1]} : vector<12x128xf32> to vector<1x128xf32>
    %60 = vector.broadcast %58 : vector<8x1xf32> to vector<8x128xf32>
    %61 = vector.broadcast %59 : vector<1x128xf32> to vector<8x128xf32>
    %62 = arith.mulf %60, %61 : vector<8x128xf32>
    %63 = arith.addf %57, %62 : vector<8x128xf32>
    %64 = vector.extract_strided_slice %0 {offsets = [0, 10], sizes = [8, 1], strides = [1, 1]} : vector<8x12xf32> to vector<8x1xf32>
    %65 = vector.extract_strided_slice %1 {offsets = [10, 0], sizes = [1, 128], strides = [1, 1]} : vector<12x128xf32> to vector<1x128xf32>
    %66 = vector.broadcast %64 : vector<8x1xf32> to vector<8x128xf32>
    %67 = vector.broadcast %65 : vector<1x128xf32> to vector<8x128xf32>
    %68 = arith.mulf %66, %67 : vector<8x128xf32>
    %69 = arith.addf %63, %68 : vector<8x128xf32>
    %70 = vector.extract_strided_slice %0 {offsets = [0, 11], sizes = [8, 1], strides = [1, 1]} : vector<8x12xf32> to vector<8x1xf32>
    %71 = vector.extract_strided_slice %1 {offsets = [11, 0], sizes = [1, 128], strides = [1, 1]} : vector<12x128xf32> to vector<1x128xf32>
    %72 = vector.broadcast %70 : vector<8x1xf32> to vector<8x128xf32>
    %73 = vector.broadcast %71 : vector<1x128xf32> to vector<8x128xf32>
    %74 = arith.mulf %72, %73 : vector<8x128xf32>
    %75 = arith.addf %69, %74 : vector<8x128xf32>
    %c0_5 = arith.constant 0 : index
    %c0_6 = arith.constant 0 : index
    %76 = vector.load %arg2[%c0_5, %c0_6] : memref<8x128xf32, #tpu.memory_space<vmem>>, vector<8x128xf32>
    %77 = arith.addf %76, %75 : vector<8x128xf32>
    %c0_7 = arith.constant 0 : index
    %c0_8 = arith.constant 0 : index
    %78 = vector.load %arg5[%c0_7, %c0_8] : memref<8x128xf32, #tpu.memory_space<vmem>>, vector<8x128xf32>
    tpu.vector_store %arg5[%c0_7, %c0_8], %77 {strides = array<i32>} : memref<8x128xf32, #tpu.memory_space<vmem>>, vector<8x128xf32>,
    return
  }
  func.func @transform_0(%arg0: i32) -> (i32, i32) {
    %c0_i32 = arith.constant 0 : i32
    %c0_i32_0 = arith.constant 0 : i32
    return %arg0, %c0_i32 : i32, i32
  }
  func.func @transform_1(%arg0: i32) -> (i32, i32) {
    %c0_i32 = arith.constant 0 : i32
    %c0_i32_0 = arith.constant 0 : i32
    return %arg0, %c0_i32 : i32, i32
  }
  func.func @transform_2(%arg0: i32) -> (i32, i32) {
    %c0_i32 = arith.constant 0 : i32
    %c0_i32_0 = arith.constant 0 : i32
    %c0_i32_1 = arith.constant 0 : i32
    return %c0_i32, %c0_i32_0 : i32, i32
  }
  func.func @transform_3(%arg0: i32) -> (i32, i32) {
    %c0_i32 = arith.constant 0 : i32
    %c0_i32_0 = arith.constant 0 : i32
    %c0_i32_1 = arith.constant 0 : i32
    return %c0_i32, %c0_i32_0 : i32, i32
  }
  func.func @transform_4(%arg0: i32) -> (i32, i32) {
    %c0_i32 = arith.constant 0 : i32
    %c0_i32_0 = arith.constant 0 : i32
    return %arg0, %c0_i32 : i32, i32
  }
}

</mosaic_0001>

<llo_original>
// kernel: tpu_custom_call.1
$region0: #{tpu_custom_call.1}
  #allocation0 [shape = 'u32[]', space=smem, size = 0x4, offset = 0x4, fixed_abs, tag = 'smem constant byte address 0x4 - core index']
  #allocation1 [shape = 'u32[144,128]{1,0:T(1,128)}', space=vmem, size = 0x12000, scoped, tag = 'internal scratch']
  %s0 = inlined_call_operand.hbm [shape: f32[8,12], index: 0, kind: input, shape index: {}]
  %s1 = inlined_call_operand.hbm [shape: f32[8,128], index: 1, kind: input, shape index: {}]
  %s2 = inlined_call_operand.hbm [shape: f32[12,128], index: 2, kind: input, shape index: {}]
  %s3 = inlined_call_operand.vmem [shape: f32[1,128], index: 3, kind: input, shape index: {}]
  %s4 = inlined_call_operand.hbm [shape: f32[8,128], index: 4, kind: output, shape index: {}]
  %s5 = sld [smem:[#allocation0]]
  $region38: #{tpu_custom_call.1} parent=0
    _
  %s7 = ssub.s32 1, %s5
  %s8 = scalar_select 0, %s7, %s5
  $region1: #{tpu_custom_call.1} parent=0
    #allocation2 [shape = 'u8[4096]{0}', space=vmem, size = 0x1000, scoped, tag = 'input window, operand 0, single buffered']
    #allocation3 [shape = 's32[1]{0}', space=sflag, size = 0x4, scoped, tag = 'scoped memory for tpu_custom_call.1']
    #allocation4 [shape = 's32[1]{0}', space=sflag, size = 0x4, scoped, tag = 'scoped memory for tpu_custom_call.1']
    #allocation5 [shape = 'u8[4096]{0}', space=vmem, size = 0x1000, scoped, tag = 'input window, operand 1, single buffered']
    #allocation6 [shape = 's32[1]{0}', space=sflag, size = 0x4, scoped, tag = 'scoped memory for tpu_custom_call.1']
    #allocation7 [shape = 'u8[8192]{0}', space=vmem, size = 0x2000, scoped, tag = 'input window, operand 2, single buffered']
    #allocation8 [shape = 'u8[4096]{0}', space=vmem, size = 0x1000, scoped, tag = 'output window, operand 0, single buffered']
    %9 = vsyncpa [#allocation3], 0
    %10 = vsyncpa [#allocation6], 0
    %11 = vsyncpa [#allocation4], 0
    // Predicated region
    $region2: #{tpu_custom_call.1} parent=1 // pred_check
      _
    $region3: #{tpu_custom_call.1} parent=1 // pred_check_branch
      %13 = sbr.rel (0) target = $region5
    $region4: #{tpu_custom_call.1} parent=1 // pred_region
      %s15 = ssub.s32 128, 128
      %16 = vsyncadd [#allocation3], %s15
      %s18 = sshll.u32 [#allocation2], 4
      %s19 = int_to_ptr.vmem [resolvable:$true] %s18
      %21 = dma.hbm_to_vmem [thread:$0]  %s0, 128, %s19, [#allocation3]
    $region5: #{tpu_custom_call.1} parent=1 // pred_fallthru
      _
    // Predicated region
    $region6: #{tpu_custom_call.1} parent=1 // pred_check
      _
    $region7: #{tpu_custom_call.1} parent=1 // pred_check_branch
      %23 = sbr.rel (0) target = $region9
    $region8: #{tpu_custom_call.1} parent=1 // pred_region
      %s25 = ssub.s32 128, 128
      %26 = vsyncadd [#allocation6], %s25
      %s28 = sshll.u32 [#allocation5], 4
      %s29 = int_to_ptr.vmem [resolvable:$true] %s28
      %31 = dma.hbm_to_vmem [thread:$0]  %s1, 128, %s29, [#allocation6]
    $region9: #{tpu_custom_call.1} parent=1 // pred_fallthru
      _
    // Predicated region
    $region10: #{tpu_custom_call.1} parent=1 // pred_check
      _
    $region11: #{tpu_custom_call.1} parent=1 // pred_check_branch
      %33 = sbr.rel (0) target = $region13
    $region12: #{tpu_custom_call.1} parent=1 // pred_region
      %s35 = ssub.s32 256, 256
      %36 = vsyncadd [#allocation6], %s35
      %s37 = sshll.u32 [#allocation7], 4
      %s38 = int_to_ptr.vmem [resolvable:$true] %s37
      %43 = dma.hbm_to_vmem [thread:$0]  %s2, 256, %s38, [#allocation6], 128, 128, 8
    $region13: #{tpu_custom_call.1} parent=1 // pred_fallthru
      _
    // Predicated region
    $region14: #{tpu_custom_call.1} parent=1 // pred_check
      _
    $region15: #{tpu_custom_call.1} parent=1 // pred_check_branch
      %45 = sbr.rel (0) target = $region17
    $region16: #{tpu_custom_call.1} parent=1 // pred_region
      _
    $region17: #{tpu_custom_call.1} parent=1 // pred_fallthru
      _
    // Predicated region
    $region18: #{tpu_custom_call.1} parent=1 // pred_check
      _
    $region19: #{tpu_custom_call.1} parent=1 // pred_check_branch
      %47 = sbr.rel (0) target = $region21
    $region20: #{tpu_custom_call.1} parent=1 // pred_region
      %48 = dma.done [#allocation3], 128
    $region21: #{tpu_custom_call.1} parent=1 // pred_fallthru
      _
    // Predicated region
    $region22: #{tpu_custom_call.1} parent=1 // pred_check
      _
    $region23: #{tpu_custom_call.1} parent=1 // pred_check_branch
      %50 = sbr.rel (0) target = $region25
    $region24: #{tpu_custom_call.1} parent=1 // pred_region
      %51 = dma.done [#allocation6], 128
    $region25: #{tpu_custom_call.1} parent=1 // pred_fallthru
      _
    // Predicated region
    $region26: #{tpu_custom_call.1} parent=1 // pred_check
      _
    $region27: #{tpu_custom_call.1} parent=1 // pred_check_branch
      %53 = sbr.rel (0) target = $region29
    $region28: #{tpu_custom_call.1} parent=1 // pred_region
      %54 = dma.done [#allocation6], 256
    $region29: #{tpu_custom_call.1} parent=1 // pred_fallthru
      _
    %v55 = vld [vmem:[#allocation2] sm:$0xff]
    %v56 = vld [vmem:[#allocation7] sm:$0xff]
    %v57 = vld [vmem:[#allocation7 + $0x8] sm:$0xf]
    %v58 = vld [vmem:[%s3] sm:$0x1]
    %60 = vset.pattern.permute.xlu0 0
    %61 = vperm.xlu0 %60, %v55
    %v62 = vpop.permute.xlu0 %61
    %v64 = vlaneseq
    %v65 = vshrl.u32 %v64, 7
    %v66 = vsub.s32 0, %v65
    %v67 = vrot.slane %v56, %v66
    %v68 = vmul.f32 %v62, %v67
    %v70 = vlaneseq
    %v71 = vshrl.u32 %v70, 7
    %v72 = vsub.s32 0, %v71
    %v73 = vrot.slane %v58, %v72
    %v75 = vadd.f32 %v73, %v68
    %76 = vset.pattern.permute.xlu0 1
    %77 = vperm.xlu0 %76, %v55
    %v78 = vpop.permute.xlu0 %77
    %v80 = vlaneseq
    %v81 = vshrl.u32 %v80, 7
    %v82 = vsub.s32 1, %v81
    %v83 = vrot.slane %v56, %v82
    %v84 = vmul.f32 %v78, %v83
    %v85 = vadd.f32 %v75, %v84
    %86 = vset.pattern.permute.xlu0 2
    %87 = vperm.xlu0 %86, %v55
    %v88 = vpop.permute.xlu0 %87
    %v90 = vlaneseq
    %v91 = vshrl.u32 %v90, 7
    %v92 = vsub.s32 2, %v91
    %v93 = vrot.slane %v56, %v92
    %v94 = vmul.f32 %v88, %v93
    %v95 = vadd.f32 %v85, %v94
    %96 = vset.pattern.permute.xlu0 3
    %97 = vperm.xlu0 %96, %v55
    %v98 = vpop.permute.xlu0 %97
    %v100 = vlaneseq
    %v101 = vshrl.u32 %v100, 7
    %v102 = vsub.s32 3, %v101
    %v103 = vrot.slane %v56, %v102
    %v104 = vmul.f32 %v98, %v103
    %v105 = vadd.f32 %v95, %v104
    %106 = vset.pattern.permute.xlu0 4
    %107 = vperm.xlu0 %106, %v55
    %v108 = vpop.permute.xlu0 %107
    %v110 = vlaneseq
    %v111 = vshrl.u32 %v110, 7
    %v112 = vsub.s32 4, %v111
    %v113 = vrot.slane %v56, %v112
    %v114 = vmul.f32 %v108, %v113
    %v115 = vadd.f32 %v105, %v114
    %116 = vset.pattern.permute.xlu0 5
    %117 = vperm.xlu0 %116, %v55
    %v118 = vpop.permute.xlu0 %117
    %v120 = vlaneseq
    %v121 = vshrl.u32 %v120, 7
    %v122 = vsub.s32 5, %v121
    %v123 = vrot.slane %v56, %v122
    %v124 = vmul.f32 %v118, %v123
    %v125 = vadd.f32 %v115, %v124
    %126 = vset.pattern.permute.xlu0 6
    %127 = vperm.xlu0 %126, %v55
    %v128 = vpop.permute.xlu0 %127
    %v130 = vlaneseq
    %v131 = vshrl.u32 %v130, 7
    %v132 = vsub.s32 6, %v131
    %v133 = vrot.slane %v56, %v132
    %v134 = vmul.f32 %v128, %v133
    %v135 = vadd.f32 %v125, %v134
    %136 = vset.pattern.permute.xlu0 7
    %137 = vperm.xlu0 %136, %v55
    %v138 = vpop.permute.xlu0 %137
    %v140 = vlaneseq
    %v141 = vshrl.u32 %v140, 7
    %v142 = vsub.s32 7, %v141
    %v143 = vrot.slane %v56, %v142
    %v144 = vmul.f32 %v138, %v143
    %v145 = vadd.f32 %v135, %v144
    %146 = vset.pattern.permute.xlu0 8
    %147 = vperm.xlu0 %146, %v55
    %v148 = vpop.permute.xlu0 %147
    %v150 = vlaneseq
    %v151 = vshrl.u32 %v150, 7
    %v152 = vsub.s32 0, %v151
    %v153 = vrot.slane %v57, %v152
    %v154 = vmul.f32 %v148, %v153
    %v155 = vadd.f32 %v145, %v154
    %156 = vset.pattern.permute.xlu0 9
    %157 = vperm.xlu0 %156, %v55
    %v158 = vpop.permute.xlu0 %157
    %v160 = vlaneseq
    %v161 = vshrl.u32 %v160, 7
    %v162 = vsub.s32 1, %v161
    %v163 = vrot.slane %v57, %v162
    %v164 = vmul.f32 %v158, %v163
    %v165 = vadd.f32 %v155, %v164
    %166 = vset.pattern.permute.xlu0 10
    %167 = vperm.xlu0 %166, %v55
    %v168 = vpop.permute.xlu0 %167
    %v170 = vlaneseq
    %v171 = vshrl.u32 %v170, 7
    %v172 = vsub.s32 2, %v171
    %v173 = vrot.slane %v57, %v172
    %v174 = vmul.f32 %v168, %v173
    %v175 = vadd.f32 %v165, %v174
    %176 = vset.pattern.permute.xlu0 11
    %177 = vperm.xlu0 %176, %v55
    %v178 = vpop.permute.xlu0 %177
    %v180 = vlaneseq
    %v181 = vshrl.u32 %v180, 7
    %v182 = vsub.s32 3, %v181
    %v183 = vrot.slane %v57, %v182
    %v184 = vmul.f32 %v178, %v183
    %v185 = vadd.f32 %v175, %v184
    %v186 = vld [vmem:[#allocation5] sm:$0xff]
    %v187 = vadd.f32 %v186, %v185
    %188 = vst [vmem:[#allocation8] sm:$0xff] %v187
    // Predicated region
    $region30: #{tpu_custom_call.1} parent=1 // pred_check
      _
    $region31: #{tpu_custom_call.1} parent=1 // pred_check_branch
      %190 = sbr.rel (0) target = $region33
    $region32: #{tpu_custom_call.1} parent=1 // pred_region
      %s192 = ssub.s32 128, 128
      %193 = vsyncadd [#allocation4], %s192
      %s195 = sshll.u32 [#allocation8], 4
      %s196 = int_to_ptr.vmem [resolvable:$true] %s195
      %198 = dma.vmem_to_hbm [thread:$0]  %s196, 128, %s4, [#allocation4]
    $region33: #{tpu_custom_call.1} parent=1 // pred_fallthru
      _
    // Predicated region
    $region34: #{tpu_custom_call.1} parent=1 // pred_check
      _
    $region35: #{tpu_custom_call.1} parent=1 // pred_check_branch
      %200 = sbr.rel (0) target = $region37
    $region36: #{tpu_custom_call.1} parent=1 // pred_region
      %201 = dma.done [#allocation4], 128
    $region37: #{tpu_custom_call.1} parent=1 // pred_fallthru
      _
    %202 = vsyncpa [#allocation3], 1
    %203 = vsyncpa [#allocation6], 1
    %204 = vsyncpa [#allocation4], 1

</llo_original>
